<compile_context>
chip_gen: v6e
topology: v6e:2x2x1
jax: 0.10.0
libtpu: 0.0.40
codegen_flags: <defaults>
</compile_context>

<pallas_src>
import jax
import jax.numpy as jnp
from jax.experimental import pallas as pl
from jax.experimental.pallas import tpu as pltpu

_LANES = 128


def chanel_kernel(p_ref, x_ref, o_ref):
    # p_ref : SMEM f32[25] packed as
    #   [ 0:11] n1: w10(3), b10, w11(3), b11, w2(2), b2
    #   [11:22] n2: same layout
    #   [22:25] top fc21: w(2), b
    # x_ref : VMEM [6, S, 128]  (feature, sublane-rows, lanes) -- vreg dense
    # o_ref : VMEM [S, 128]

    # Bind all 25 SMEM scalars to locals once so the scalar->vreg splats are
    # hoisted out of the per-vreg-chunk loop (JAX does not CSE broadcasts).
    w = [p_ref[i] for i in range(25)]

    # Each feature is a dense (S, 128) slab: 8 sublanes x 128 lanes per vreg.
    # Compute in f32 regardless of the (possibly bf16) i/o dtype.
    f = [x_ref[k].astype(jnp.float32) for k in range(6)]

    def net2(b):
        h1 = jnp.maximum(
            w[b + 0] * f[0] + w[b + 1] * f[1] + w[b + 2] * f[2] + w[b + 3], 0.0)
        h2 = jnp.maximum(
            w[b + 4] * f[3] + w[b + 5] * f[4] + w[b + 6] * f[5] + w[b + 7], 0.0)
        return jax.nn.sigmoid(w[b + 8] * h1 + w[b + 9] * h2 + w[b + 10])

    y1 = net2(0)     # n1
    y2 = net2(11)    # n2
    out = jax.nn.sigmoid(w[22] * y1 + w[23] * y2 + w[24])
    o_ref[...] = out.astype(o_ref.dtype)


def chanel_forward_feature_major(params_packed, x_fm, *, tb=65536):
    """Fast path: x_fm is feature-major [6, B] (batch contiguous).

    Keeping the data feature-major upstream avoids a full HBM transpose round
    trip in front of what is otherwise a pure streaming op.  Returns [B] in
    x_fm.dtype.
    """
    assert x_fm.shape[0] == 6
    B = x_fm.shape[1]
    io_dtype = x_fm.dtype

    # tb // 128 sublane-rows must be a multiple of the native sublane tile:
    # 8 for f32 (tb % 1024 == 0), 16 for bf16 (tb % 2048 == 0).
    tile_mult = 2048 if io_dtype == jnp.bfloat16 else 1024

    units = max(1, pl.cdiv(B, tile_mult))     # minimum #tile_mult chunks
    max_units = max(1, tb // tile_mult)       # requested tile cap, in chunks
    if units >= 2:
        # Guarantee >= 2 grid tiles so v7x can shard them across its 2 TCs.
        tb_units = min(max_units, pl.cdiv(units, 2))
    else:
        tb_units = 1
    tb_elems = tb_units * tile_mult
    n_tiles = pl.cdiv(units, tb_units)
    B_pad = n_tiles * tb_elems

    # Zero-pad the batch axis and reshape (free, row-major contiguous) to the
    # vreg-dense 3-D layout (6, B_pad//128, 128).
    x3 = jnp.pad(x_fm, ((0, 0), (0, B_pad - B))).reshape(
        6, B_pad // _LANES, _LANES)

    sub = tb_elems // _LANES   # sublane-rows per tile (multiple of 8 / 16)
    out = pl.pallas_call(
        chanel_kernel,
        out_shape=jax.ShapeDtypeStruct((B_pad // _LANES, _LANES), io_dtype),
        grid=(n_tiles,),
        in_specs=[
            pl.BlockSpec(memory_space=pltpu.MemorySpace.SMEM),    # 25 params
            pl.BlockSpec((6, sub, _LANES), lambda i: (0, i, 0)),  # x tile
        ],
        out_specs=pl.BlockSpec((sub, _LANES), lambda i: (i, 0)),
        compiler_params=pltpu.CompilerParams(
            dimension_semantics=("parallel",)),
    )(params_packed, x3)

    return out.reshape(B_pad)[:B]


def chanel_forward(params_packed, x, *, tb=65536, io_dtype=None):
    """PyTorch-layout wrapper: x [B, 6] -> [B, 1].

    io_dtype: optionally jnp.bfloat16 on v6e/v7x to halve HBM bytes (kernel
    math stays f32); leave None (f32) on v5e.  If the producer can emit
    feature-major [6, B] directly, call chanel_forward_feature_major instead
    and skip this wrapper's transpose.
    """
    dt = io_dtype if io_dtype is not None else x.dtype
    x_fm = x.T.astype(dt)
    y = chanel_forward_feature_major(params_packed, x_fm, tb=tb)
    return y.reshape(x.shape[0], 1)


# ---------------- parameter init / pure-JAX reference ----------------

def _init_net2_params(key):
    """nn.Linear-style U(-1/sqrt(fan_in), 1/sqrt(fan_in)) init for one Net2."""
    k = jax.random.split(key, 6)
    bnd3 = 1.0 / jnp.sqrt(3.0)
    bnd2 = 1.0 / jnp.sqrt(2.0)
    w10 = jax.random.uniform(k[0], (3,), jnp.float32, -bnd3, bnd3)
    b10 = jax.random.uniform(k[1], (1,), jnp.float32, -bnd3, bnd3)
    w11 = jax.random.uniform(k[2], (3,), jnp.float32, -bnd3, bnd3)
    b11 = jax.random.uniform(k[3], (1,), jnp.float32, -bnd3, bnd3)
    w2 = jax.random.uniform(k[4], (2,), jnp.float32, -bnd2, bnd2)
    b2 = jax.random.uniform(k[5], (1,), jnp.float32, -bnd2, bnd2)
    return (w10, b10, w11, b11, w2, b2)


def init_params(key):
    k1, k2, k3 = jax.random.split(key, 3)
    p1 = _init_net2_params(k1)
    p2 = _init_net2_params(k2)
    bnd2 = 1.0 / jnp.sqrt(2.0)
    kk = jax.random.split(k3, 2)
    wt = jax.random.uniform(kk[0], (2,), jnp.float32, -bnd2, bnd2)
    bt = jax.random.uniform(kk[1], (1,), jnp.float32, -bnd2, bnd2)
    packed = jnp.concatenate(list(p1) + list(p2) + [wt, bt]).astype(jnp.float32)
    assert packed.shape == (25,)
    return packed, (p1, p2, (wt, bt))


def _net2_reference(p, x):
    w10, b10, w11, b11, w2, b2 = p
    h1 = jax.nn.relu(x[:, :3] @ w10[:, None] + b10)
    h2 = jax.nn.relu(x[:, 3:] @ w11[:, None] + b11)
    return jax.nn.sigmoid(jnp.concatenate([h1, h2], axis=1) @ w2[:, None] + b2)


def chanel_reference(params, x):
    p1, p2, (wt, bt) = params
    y1 = _net2_reference(p1, x)
    y2 = _net2_reference(p2, x)
    return jax.nn.sigmoid(jnp.concatenate([y1, y2], axis=1) @ wt[:, None] + bt)


if __name__ == "__main__":
    key = jax.random.PRNGKey(0)
    pkey, xkey, xkey2 = jax.random.split(key, 3)

    packed, params = init_params(pkey)

    # Small batch; feature dim 6 as implied by the module (x[:, :3] / x[:, 3:]).
    B = 2
    x = jax.random.uniform(xkey, (B, 6), jnp.float32, 0.0, 70.0)
    out = jax.block_until_ready(chanel_forward(packed, x))
    ref = chanel_reference(params, x)
    assert out.shape == (B, 1)
    assert jnp.allclose(out, ref, atol=1e-5, rtol=1e-5), (out, ref)

    # Second check: a batch that exercises zero-padding and the >=2-tile grid
    # path (v7x megacore sharding) with the dense 3-D layout.
    B2 = 2500
    x2 = jax.random.uniform(xkey2, (B2, 6), jnp.float32, 0.0, 70.0)
    out2 = jax.block_until_ready(chanel_forward(packed, x2))
    ref2 = chanel_reference(params, x2)
    assert out2.shape == (B2, 1)
    assert jnp.allclose(out2, ref2, atol=1e-5, rtol=1e-5)

    print("KERNEL_OK")
</pallas_src>

<mosaic_0001>
module attributes {stable_mosaic.version = 11 : i64} {
  func.func @chanel_kernel(%arg0: i32, %arg1: memref<25xf32, #tpu.memory_space<smem>>, %arg2: memref<6x8x128xf32, #tpu.memory_space<vmem>>, %arg3: memref<8x128xf32, #tpu.memory_space<vmem>>) attributes {dimension_semantics = [#tpu.dimension_semantics<parallel>], iteration_bounds = array<i64: 1>, scalar_prefetch = 0 : i64, scratch_operands = 0 : i64, tpu.core_type = #tpu.core_type<tc>, window_params = [{transform_indices = @transform_0, window_bounds = array<i64: 25>}, {transform_indices = @transform_1, window_bounds = array<i64: 6, 8, 128>}, {transform_indices = @transform_2, window_bounds = array<i64: 8, 128>}]} {
    %c0 = arith.constant 0 : index
    %0 = memref.load %arg1[%c0] : memref<25xf32, #tpu.memory_space<smem>>
    %c1 = arith.constant 1 : index
    %1 = memref.load %arg1[%c1] : memref<25xf32, #tpu.memory_space<smem>>
    %c2 = arith.constant 2 : index
    %2 = memref.load %arg1[%c2] : memref<25xf32, #tpu.memory_space<smem>>
    %c3 = arith.constant 3 : index
    %3 = memref.load %arg1[%c3] : memref<25xf32, #tpu.memory_space<smem>>
    %c4 = arith.constant 4 : index
    %4 = memref.load %arg1[%c4] : memref<25xf32, #tpu.memory_space<smem>>
    %c5 = arith.constant 5 : index
    %5 = memref.load %arg1[%c5] : memref<25xf32, #tpu.memory_space<smem>>
    %c6 = arith.constant 6 : index
    %6 = memref.load %arg1[%c6] : memref<25xf32, #tpu.memory_space<smem>>
    %c7 = arith.constant 7 : index
    %7 = memref.load %arg1[%c7] : memref<25xf32, #tpu.memory_space<smem>>
    %c8 = arith.constant 8 : index
    %8 = memref.load %arg1[%c8] : memref<25xf32, #tpu.memory_space<smem>>
    %c9 = arith.constant 9 : index
    %9 = memref.load %arg1[%c9] : memref<25xf32, #tpu.memory_space<smem>>
    %c10 = arith.constant 10 : index
    %10 = memref.load %arg1[%c10] : memref<25xf32, #tpu.memory_space<smem>>
    %c11 = arith.constant 11 : index
    %11 = memref.load %arg1[%c11] : memref<25xf32, #tpu.memory_space<smem>>
    %c12 = arith.constant 12 : index
    %12 = memref.load %arg1[%c12] : memref<25xf32, #tpu.memory_space<smem>>
    %c13 = arith.constant 13 : index
    %13 = memref.load %arg1[%c13] : memref<25xf32, #tpu.memory_space<smem>>
    %c14 = arith.constant 14 : index
    %14 = memref.load %arg1[%c14] : memref<25xf32, #tpu.memory_space<smem>>
    %c15 = arith.constant 15 : index
    %15 = memref.load %arg1[%c15] : memref<25xf32, #tpu.memory_space<smem>>
    %c16 = arith.constant 16 : index
    %16 = memref.load %arg1[%c16] : memref<25xf32, #tpu.memory_space<smem>>
    %c17 = arith.constant 17 : index
    %17 = memref.load %arg1[%c17] : memref<25xf32, #tpu.memory_space<smem>>
    %c18 = arith.constant 18 : index
    %18 = memref.load %arg1[%c18] : memref<25xf32, #tpu.memory_space<smem>>
    %c19 = arith.constant 19 : index
    %19 = memref.load %arg1[%c19] : memref<25xf32, #tpu.memory_space<smem>>
    %c20 = arith.constant 20 : index
    %20 = memref.load %arg1[%c20] : memref<25xf32, #tpu.memory_space<smem>>
    %c21 = arith.constant 21 : index
    %21 = memref.load %arg1[%c21] : memref<25xf32, #tpu.memory_space<smem>>
    %c22 = arith.constant 22 : index
    %22 = memref.load %arg1[%c22] : memref<25xf32, #tpu.memory_space<smem>>
    %c23 = arith.constant 23 : index
    %23 = memref.load %arg1[%c23] : memref<25xf32, #tpu.memory_space<smem>>
    %c24 = arith.constant 24 : index
    %24 = memref.load %arg1[%c24] : memref<25xf32, #tpu.memory_space<smem>>
    %c0_0 = arith.constant 0 : index
    %c0_1 = arith.constant 0 : index
    %c0_2 = arith.constant 0 : index
    %25 = vector.load %arg2[%c0_0, %c0_1, %c0_2] : memref<6x8x128xf32, #tpu.memory_space<vmem>>, vector<1x8x128xf32>
    %26 = vector.shape_cast %25 : vector<1x8x128xf32> to vector<8x128xf32>
    %c1_3 = arith.constant 1 : index
    %c0_4 = arith.constant 0 : index
    %c0_5 = arith.constant 0 : index
    %27 = vector.load %arg2[%c1_3, %c0_4, %c0_5] : memref<6x8x128xf32, #tpu.memory_space<vmem>>, vector<1x8x128xf32>
    %28 = vector.shape_cast %27 : vector<1x8x128xf32> to vector<8x128xf32>
    %c2_6 = arith.constant 2 : index
    %c0_7 = arith.constant 0 : index
    %c0_8 = arith.constant 0 : index
    %29 = vector.load %arg2[%c2_6, %c0_7, %c0_8] : memref<6x8x128xf32, #tpu.memory_space<vmem>>, vector<1x8x128xf32>
    %30 = vector.shape_cast %29 : vector<1x8x128xf32> to vector<8x128xf32>
    %c3_9 = arith.constant 3 : index
    %c0_10 = arith.constant 0 : index
    %c0_11 = arith.constant 0 : index
    %31 = vector.load %arg2[%c3_9, %c0_10, %c0_11] : memref<6x8x128xf32, #tpu.memory_space<vmem>>, vector<1x8x128xf32>
    %32 = vector.shape_cast %31 : vector<1x8x128xf32> to vector<8x128xf32>
    %c4_12 = arith.constant 4 : index
    %c0_13 = arith.constant 0 : index
    %c0_14 = arith.constant 0 : index
    %33 = vector.load %arg2[%c4_12, %c0_13, %c0_14] : memref<6x8x128xf32, #tpu.memory_space<vmem>>, vector<1x8x128xf32>
    %34 = vector.shape_cast %33 : vector<1x8x128xf32> to vector<8x128xf32>
    %c5_15 = arith.constant 5 : index
    %c0_16 = arith.constant 0 : index
    %c0_17 = arith.constant 0 : index
    %35 = vector.load %arg2[%c5_15, %c0_16, %c0_17] : memref<6x8x128xf32, #tpu.memory_space<vmem>>, vector<1x8x128xf32>
    %36 = vector.shape_cast %35 : vector<1x8x128xf32> to vector<8x128xf32>
    %37 = vector.broadcast %0 : f32 to vector<8x128xf32>
    %38 = arith.mulf %37, %26 : vector<8x128xf32>
    %39 = vector.broadcast %1 : f32 to vector<8x128xf32>
    %40 = arith.mulf %39, %28 : vector<8x128xf32>
    %41 = arith.addf %38, %40 : vector<8x128xf32>
    %42 = vector.broadcast %2 : f32 to vector<8x128xf32>
    %43 = arith.mulf %42, %30 : vector<8x128xf32>
    %44 = arith.addf %41, %43 : vector<8x128xf32>
    %45 = vector.broadcast %3 : f32 to vector<8x128xf32>
    %46 = arith.addf %44, %45 : vector<8x128xf32>
    %cst = arith.constant 0.000000e+00 : f32
    %47 = vector.broadcast %cst : f32 to vector<8x128xf32>
    %48 = arith.maximumf %46, %47 : vector<8x128xf32>
    %49 = vector.broadcast %4 : f32 to vector<8x128xf32>
    %50 = arith.mulf %49, %32 : vector<8x128xf32>
    %51 = vector.broadcast %5 : f32 to vector<8x128xf32>
    %52 = arith.mulf %51, %34 : vector<8x128xf32>
    %53 = arith.addf %50, %52 : vector<8x128xf32>
    %54 = vector.broadcast %6 : f32 to vector<8x128xf32>
    %55 = arith.mulf %54, %36 : vector<8x128xf32>
    %56 = arith.addf %53, %55 : vector<8x128xf32>
    %57 = vector.broadcast %7 : f32 to vector<8x128xf32>
    %58 = arith.addf %56, %57 : vector<8x128xf32>
    %cst_18 = arith.constant 0.000000e+00 : f32
    %59 = vector.broadcast %cst_18 : f32 to vector<8x128xf32>
    %60 = arith.maximumf %58, %59 : vector<8x128xf32>
    %61 = vector.broadcast %8 : f32 to vector<8x128xf32>
    %62 = arith.mulf %61, %48 : vector<8x128xf32>
    %63 = vector.broadcast %9 : f32 to vector<8x128xf32>
    %64 = arith.mulf %63, %60 : vector<8x128xf32>
    %65 = arith.addf %62, %64 : vector<8x128xf32>
    %66 = vector.broadcast %10 : f32 to vector<8x128xf32>
    %67 = arith.addf %65, %66 : vector<8x128xf32>
    %68 = arith.negf %67 : vector<8x128xf32>
    %69 = math.exp %68 : vector<8x128xf32>
    %cst_19 = arith.constant 1.000000e+00 : f32
    %70 = vector.broadcast %cst_19 : f32 to vector<8x128xf32>
    %71 = arith.addf %70, %69 : vector<8x128xf32>
    %72 = arith.divf %70, %71 : vector<8x128xf32>
    %73 = vector.broadcast %11 : f32 to vector<8x128xf32>
    %74 = arith.mulf %73, %26 : vector<8x128xf32>
    %75 = vector.broadcast %12 : f32 to vector<8x128xf32>
    %76 = arith.mulf %75, %28 : vector<8x128xf32>
    %77 = arith.addf %74, %76 : vector<8x128xf32>
    %78 = vector.broadcast %13 : f32 to vector<8x128xf32>
    %79 = arith.mulf %78, %30 : vector<8x128xf32>
    %80 = arith.addf %77, %79 : vector<8x128xf32>
    %81 = vector.broadcast %14 : f32 to vector<8x128xf32>
    %82 = arith.addf %80, %81 : vector<8x128xf32>
    %cst_20 = arith.constant 0.000000e+00 : f32
    %83 = vector.broadcast %cst_20 : f32 to vector<8x128xf32>
    %84 = arith.maximumf %82, %83 : vector<8x128xf32>
    %85 = vector.broadcast %15 : f32 to vector<8x128xf32>
    %86 = arith.mulf %85, %32 : vector<8x128xf32>
    %87 = vector.broadcast %16 : f32 to vector<8x128xf32>
    %88 = arith.mulf %87, %34 : vector<8x128xf32>
    %89 = arith.addf %86, %88 : vector<8x128xf32>
    %90 = vector.broadcast %17 : f32 to vector<8x128xf32>
    %91 = arith.mulf %90, %36 : vector<8x128xf32>
    %92 = arith.addf %89, %91 : vector<8x128xf32>
    %93 = vector.broadcast %18 : f32 to vector<8x128xf32>
    %94 = arith.addf %92, %93 : vector<8x128xf32>
    %cst_21 = arith.constant 0.000000e+00 : f32
    %95 = vector.broadcast %cst_21 : f32 to vector<8x128xf32>
    %96 = arith.maximumf %94, %95 : vector<8x128xf32>
    %97 = vector.broadcast %19 : f32 to vector<8x128xf32>
    %98 = arith.mulf %97, %84 : vector<8x128xf32>
    %99 = vector.broadcast %20 : f32 to vector<8x128xf32>
    %100 = arith.mulf %99, %96 : vector<8x128xf32>
    %101 = arith.addf %98, %100 : vector<8x128xf32>
    %102 = vector.broadcast %21 : f32 to vector<8x128xf32>
    %103 = arith.addf %101, %102 : vector<8x128xf32>
    %104 = arith.negf %103 : vector<8x128xf32>
    %105 = math.exp %104 : vector<8x128xf32>
    %cst_22 = arith.constant 1.000000e+00 : f32
    %106 = vector.broadcast %cst_22 : f32 to vector<8x128xf32>
    %107 = arith.addf %106, %105 : vector<8x128xf32>
    %108 = arith.divf %106, %107 : vector<8x128xf32>
    %109 = vector.broadcast %22 : f32 to vector<8x128xf32>
    %110 = arith.mulf %109, %72 : vector<8x128xf32>
    %111 = vector.broadcast %23 : f32 to vector<8x128xf32>
    %112 = arith.mulf %111, %108 : vector<8x128xf32>
    %113 = arith.addf %110, %112 : vector<8x128xf32>
    %114 = vector.broadcast %24 : f32 to vector<8x128xf32>
    %115 = arith.addf %113, %114 : vector<8x128xf32>
    %116 = arith.negf %115 : vector<8x128xf32>
    %117 = math.exp %116 : vector<8x128xf32>
    %cst_23 = arith.constant 1.000000e+00 : f32
    %118 = vector.broadcast %cst_23 : f32 to vector<8x128xf32>
    %119 = arith.addf %118, %117 : vector<8x128xf32>
    %120 = arith.divf %118, %119 : vector<8x128xf32>
    %c0_24 = arith.constant 0 : index
    %c0_25 = arith.constant 0 : index
    %121 = vector.load %arg3[%c0_24, %c0_25] : memref<8x128xf32, #tpu.memory_space<vmem>>, vector<8x128xf32>
    tpu.vector_store %arg3[%c0_24, %c0_25], %120 {strides = array<i32>} : memref<8x128xf32, #tpu.memory_space<vmem>>, vector<8x128xf32>,
    return
  }
  func.func @transform_0(%arg0: i32) -> i32 {
    %c0_i32 = arith.constant 0 : i32
    %c0_i32_0 = arith.constant 0 : i32
    return %c0_i32 : i32
  }
  func.func @transform_1(%arg0: i32) -> (i32, i32, i32) {
    %c0_i32 = arith.constant 0 : i32
    %c0_i32_0 = arith.constant 0 : i32
    %c0_i32_1 = arith.constant 0 : i32
    return %c0_i32, %arg0, %c0_i32_0 : i32, i32, i32
  }
  func.func @transform_2(%arg0: i32) -> (i32, i32) {
    %c0_i32 = arith.constant 0 : i32
    %c0_i32_0 = arith.constant 0 : i32
    return %arg0, %c0_i32 : i32, i32
  }
}

</mosaic_0001>

<llo_original>
// kernel: tpu_custom_call.1
$region0: #{tpu_custom_call.1}
  #allocation0 [shape = 'u32[]', space=smem, size = 0x4, offset = 0x4, fixed_abs, tag = 'smem constant byte address 0x4 - core index']
  #allocation1 [shape = 'u32[144,128]{1,0:T(1,128)}', space=vmem, size = 0x12000, scoped, tag = 'internal scratch']
  %s0 = inlined_call_operand.hbm [shape: f32[25], index: 0, kind: input, shape index: {}]
  %s1 = inlined_call_operand.hbm [shape: f32[6,8,128], index: 1, kind: input, shape index: {}]
  %s2 = inlined_call_operand.hbm [shape: f32[8,128], index: 2, kind: output, shape index: {}]
  %s3 = sld [smem:[#allocation0]]
  $region26: #{tpu_custom_call.1} parent=0
    _
  %s5 = ssub.s32 1, %s3
  %s6 = scalar_select 0, %s5, %s3
  $region1: #{tpu_custom_call.1} parent=0
    #allocation2 [shape = 'u8[512]{0}', space=smem, size = 0x200, scoped, tag = 'input window, operand 0, single buffered']
    #allocation3 [shape = 's32[1]{0}', space=sflag, size = 0x4, scoped, tag = 'scoped memory for tpu_custom_call.1']
    #allocation4 [shape = 's32[1]{0}', space=sflag, size = 0x4, scoped, tag = 'scoped memory for tpu_custom_call.1']
    #allocation5 [shape = 's32[1]{0}', space=sflag, size = 0x4, scoped, tag = 'scoped memory for tpu_custom_call.1']
    #allocation6 [shape = 'u8[24576]{0}', space=vmem, size = 0x6000, scoped, tag = 'input window, operand 1, single buffered']
    #allocation7 [shape = 'u8[4096]{0}', space=vmem, size = 0x1000, scoped, tag = 'output window, operand 0, single buffered']
    %7 = vsyncpa [#allocation5], 0
    %8 = vsyncpa [#allocation3], 0
    %9 = vsyncpa [#allocation4], 0
    // Predicated region
    $region2: #{tpu_custom_call.1} parent=1 // pred_check
      _
    $region3: #{tpu_custom_call.1} parent=1 // pred_check_branch
      %11 = sbr.rel (0) target = $region5
    $region4: #{tpu_custom_call.1} parent=1 // pred_region
      %s13 = ssub.s32 16, 16
      %14 = vsyncadd [#allocation5], %s13
      %17 = dma.hbm_to_smem %s0, 16, [#allocation2], [#allocation5]
    $region5: #{tpu_custom_call.1} parent=1 // pred_fallthru
      _
    // Predicated region
    $region6: #{tpu_custom_call.1} parent=1 // pred_check
      _
    $region7: #{tpu_custom_call.1} parent=1 // pred_check_branch
      %19 = sbr.rel (0) target = $region9
    $region8: #{tpu_custom_call.1} parent=1 // pred_region
      %s21 = ssub.s32 768, 768
      %22 = vsyncadd [#allocation3], %s21
      %s23 = sshll.u32 [#allocation6], 4
      %s24 = int_to_ptr.vmem [resolvable:$true] %s23
      %29 = dma.hbm_to_vmem [thread:$0]  %s1, 768, %s24, [#allocation3], 128, 128, 8
    $region9: #{tpu_custom_call.1} parent=1 // pred_fallthru
      _
    // Predicated region
    $region10: #{tpu_custom_call.1} parent=1 // pred_check
      _
    $region11: #{tpu_custom_call.1} parent=1 // pred_check_branch
      %31 = sbr.rel (0) target = $region13
    $region12: #{tpu_custom_call.1} parent=1 // pred_region
      %32 = dma.done [#allocation5], 16
    $region13: #{tpu_custom_call.1} parent=1 // pred_fallthru
      _
    // Predicated region
    $region14: #{tpu_custom_call.1} parent=1 // pred_check
      _
    $region15: #{tpu_custom_call.1} parent=1 // pred_check_branch
      %34 = sbr.rel (0) target = $region17
    $region16: #{tpu_custom_call.1} parent=1 // pred_region
      %35 = dma.done [#allocation3], 768
    $region17: #{tpu_custom_call.1} parent=1 // pred_fallthru
      _
    %36 = sfence
    %s37 = sld [smem:[#allocation2]]
    %s38 = sld [smem:[#allocation2 + $0x1]]
    %s39 = sld [smem:[#allocation2 + $0x2]]
    %s40 = sld [smem:[#allocation2 + $0x3]]
    %s41 = sld [smem:[#allocation2 + $0x4]]
    %s42 = sld [smem:[#allocation2 + $0x5]]
    %s43 = sld [smem:[#allocation2 + $0x6]]
    %s44 = sld [smem:[#allocation2 + $0x7]]
    %s45 = sld [smem:[#allocation2 + $0x8]]
    %s46 = sld [smem:[#allocation2 + $0x9]]
    %s47 = sld [smem:[#allocation2 + $0xa]]
    %s48 = sld [smem:[#allocation2 + $0xb]]
    %s49 = sld [smem:[#allocation2 + $0xc]]
    %s50 = sld [smem:[#allocation2 + $0xd]]
    %s51 = sld [smem:[#allocation2 + $0xe]]
    %s52 = sld [smem:[#allocation2 + $0xf]]
    %s53 = sld [smem:[#allocation2 + $0x10]]
    %s54 = sld [smem:[#allocation2 + $0x11]]
    %s55 = sld [smem:[#allocation2 + $0x12]]
    %s56 = sld [smem:[#allocation2 + $0x13]]
    %s57 = sld [smem:[#allocation2 + $0x14]]
    %s58 = sld [smem:[#allocation2 + $0x15]]
    %s59 = sld [smem:[#allocation2 + $0x16]]
    %s60 = sld [smem:[#allocation2 + $0x17]]
    %s61 = sld [smem:[#allocation2 + $0x18]]
    %v62 = vld [vmem:[#allocation6] sm:$0xff]
    %s63 = scalar_lea.vmem [#allocation6], 8
    %v64 = vld [vmem:[%s63] sm:$0xff]
    %s65 = scalar_lea.vmem [#allocation6], 16
    %v66 = vld [vmem:[%s65] sm:$0xff]
    %s67 = scalar_lea.vmem [#allocation6], 24
    %v68 = vld [vmem:[%s67] sm:$0xff]
    %s69 = scalar_lea.vmem [#allocation6], 32
    %v70 = vld [vmem:[%s69] sm:$0xff]
    %s71 = scalar_lea.vmem [#allocation6], 40
    %v72 = vld [vmem:[%s71] sm:$0xff]
    %v73 = vstv %s37
    %v74 = vmul.f32 %v73, %v62
    %v75 = vstv %s38
    %v76 = vmul.f32 %v75, %v64
    %v77 = vadd.f32 %v74, %v76
    %v78 = vstv %s39
    %v79 = vmul.f32 %v78, %v66
    %v80 = vadd.f32 %v77, %v79
    %v81 = vstv %s40
    %v82 = vadd.f32 %v80, %v81
    %v83 = vmax.f32 %v82, 0.0
    %v84 = vstv %s41
    %v85 = vmul.f32 %v84, %v68
    %v86 = vstv %s42
    %v87 = vmul.f32 %v86, %v70
    %v88 = vadd.f32 %v85, %v87
    %v89 = vstv %s43
    %v90 = vmul.f32 %v89, %v72
    %v91 = vadd.f32 %v88, %v90
    %v92 = vstv %s44
    %v93 = vadd.f32 %v91, %v92
    %v94 = vmax.f32 %v93, 0.0
    %v95 = vstv %s45
    %v96 = vmul.f32 %v95, %v83
    %v97 = vstv %s46
    %v98 = vmul.f32 %v97, %v94
    %v99 = vadd.f32 %v96, %v98
    %v100 = vstv %s47
    %v101 = vadd.f32 %v99, %v100
    %v102 = vxor.u32 %v101, 2147483648
    %v103 = vmul.f32 %v102, 1.442695
    %v104 = vpow.pop %v103
    %v105 = vadd.f32 %v104, 1.0
    %v106 = vrcp.pop %v105
    %v107 = vmul.f32 1.0, %v106
    %v108 = vstv %s48
    %v109 = vmul.f32 %v108, %v62
    %v110 = vstv %s49
    %v111 = vmul.f32 %v110, %v64
    %v112 = vadd.f32 %v109, %v111
    %v113 = vstv %s50
    %v114 = vmul.f32 %v113, %v66
    %v115 = vadd.f32 %v112, %v114
    %v116 = vstv %s51
    %v117 = vadd.f32 %v115, %v116
    %v118 = vmax.f32 %v117, 0.0
    %v119 = vstv %s52
    %v120 = vmul.f32 %v119, %v68
    %v121 = vstv %s53
    %v122 = vmul.f32 %v121, %v70
    %v123 = vadd.f32 %v120, %v122
    %v124 = vstv %s54
    %v125 = vmul.f32 %v124, %v72
    %v126 = vadd.f32 %v123, %v125
    %v127 = vstv %s55
    %v128 = vadd.f32 %v126, %v127
    %v129 = vmax.f32 %v128, 0.0
    %v130 = vstv %s56
    %v131 = vmul.f32 %v130, %v118
    %v132 = vstv %s57
    %v133 = vmul.f32 %v132, %v129
    %v134 = vadd.f32 %v131, %v133
    %v135 = vstv %s58
    %v136 = vadd.f32 %v134, %v135
    %v137 = vxor.u32 %v136, 2147483648
    %v138 = vmul.f32 %v137, 1.442695
    %v139 = vpow.pop %v138
    %v140 = vadd.f32 %v139, 1.0
    %v141 = vrcp.pop %v140
    %v142 = vmul.f32 1.0, %v141
    %v143 = vstv %s59
    %v144 = vmul.f32 %v143, %v107
    %v145 = vstv %s60
    %v146 = vmul.f32 %v145, %v142
    %v147 = vadd.f32 %v144, %v146
    %v148 = vstv %s61
    %v149 = vadd.f32 %v147, %v148
    %v150 = vxor.u32 %v149, 2147483648
    %v151 = vmul.f32 %v150, 1.442695
    %v152 = vpow.pop %v151
    %v153 = vadd.f32 %v152, 1.0
    %v154 = vrcp.pop %v153
    %v155 = vmul.f32 1.0, %v154
    %156 = vst [vmem:[#allocation7] sm:$0xff] %v155
    // Predicated region
    $region18: #{tpu_custom_call.1} parent=1 // pred_check
      _
    $region19: #{tpu_custom_call.1} parent=1 // pred_check_branch
      %158 = sbr.rel (0) target = $region21
    $region20: #{tpu_custom_call.1} parent=1 // pred_region
      %s160 = ssub.s32 128, 128
      %161 = vsyncadd [#allocation4], %s160
      %s163 = sshll.u32 [#allocation7], 4
      %s164 = int_to_ptr.vmem [resolvable:$true] %s163
      %166 = dma.vmem_to_hbm [thread:$0]  %s164, 128, %s2, [#allocation4]
    $region21: #{tpu_custom_call.1} parent=1 // pred_fallthru
      _
    // Predicated region
    $region22: #{tpu_custom_call.1} parent=1 // pred_check
      _
    $region23: #{tpu_custom_call.1} parent=1 // pred_check_branch
      %168 = sbr.rel (0) target = $region25
    $region24: #{tpu_custom_call.1} parent=1 // pred_region
      %169 = dma.done [#allocation4], 128
    $region25: #{tpu_custom_call.1} parent=1 // pred_fallthru
      _
    %170 = vsyncpa [#allocation3], 1
    %171 = vsyncpa [#allocation4], 1
    %172 = vsyncpa [#allocation5], 1

</llo_original>
